<compile_context>
chip_gen: v5e
topology: v5e:2x2
jax: 0.10.0
libtpu: 0.0.40
codegen_flags: <defaults>
</compile_context>

<pallas_src>
import functools

import jax
import jax.numpy as jnp
from jax.experimental import pallas as pl
from jax.experimental.pallas import tpu as pltpu

D_IN = 28 * 28      # 784 (full last dim of the flattened input; no padding needed)
D_H1 = 256
D_H2 = 128
D_OUT = 10
D_OUT_PAD = 128     # lane-dense padded logits (sliced back to 10 in the wrapper)


def _mlp_kernel(x_ref, w1_ref, b1_ref, w2_ref, b2_ref, w3_ref, b3_ref, o_ref):
    # Fused 3-layer MLP; all operands resident in VMEM, matmuls on the MXU.
    # f32 activations arrive straight from HBM; bf16 cast happens here (VPU),
    # MXU accumulates in f32 via preferred_element_type; bias add + ReLU in f32.
    x = x_ref[...].astype(jnp.bfloat16)                                 # (bb, 784)
    h1 = jnp.dot(x, w1_ref[...], preferred_element_type=jnp.float32)    # (bb, 256)
    h1 = jnp.maximum(h1 + b1_ref[...], 0.0).astype(jnp.bfloat16)
    h2 = jnp.dot(h1, w2_ref[...], preferred_element_type=jnp.float32)   # (bb, 128)
    h2 = jnp.maximum(h2 + b2_ref[...], 0.0).astype(jnp.bfloat16)
    out = jnp.dot(h2, w3_ref[...], preferred_element_type=jnp.float32)  # (bb, 128)
    o_ref[...] = (out + b3_ref[...]).astype(o_ref.dtype)                # bf16 store


def prepare_params(params):
    """One-time weight prep (hoisted out of the per-forward-call path)."""
    w1, b1, w2, b2, w3, b3 = params
    w1p = w1.astype(jnp.bfloat16)                                       # (784, 256)
    w2p = w2.astype(jnp.bfloat16)                                       # (256, 128)
    w3p = jnp.pad(w3, ((0, 0), (0, D_OUT_PAD - D_OUT))).astype(jnp.bfloat16)
    b1p = b1.reshape(1, D_H1).astype(jnp.float32)
    b2p = b2.reshape(1, D_H2).astype(jnp.float32)
    b3p = jnp.pad(b3.reshape(1, D_OUT),
                  ((0, 0), (0, D_OUT_PAD - D_OUT))).astype(jnp.float32)
    return (w1p, b1p, w2p, b2p, w3p, b3p)


def _batch_dim_semantics(num_blocks):
    # Only CORE_PARALLEL actually shards a grid axis across the 2 TensorCores
    # on v7x; plain "parallel" is a measured near no-op. Guard on device kind
    # and an even grid with >=2 steps per core so single-TC generations and
    # tiny grids (like the smoke test below) keep the safe default.
    try:
        kind = jax.devices()[0].device_kind.lower()
    except Exception:
        kind = ""
    if ("v7" in kind or "7x" in kind) and num_blocks >= 4 and num_blocks % 2 == 0:
        return (pltpu.CORE_PARALLEL,)
    return ("parallel",)


@functools.partial(jax.jit, static_argnames=("block_b",))
def classifier_forward(x, prepared_params, *, block_b=None):
    """x: (B, 1, 28, 28) float32 (NCHW, like torch). Returns (B, 10) f32 logits."""
    w1p, b1p, w2p, b2p, w3p, b3p = prepared_params
    B = x.shape[0]
    if block_b is None:
        # Big batch tiles amortize per-grid-step overhead; (1024, 784) f32 tile
        # is ~3.1 MiB (double-buffered ~6.3 MiB) -> comfortably inside the
        # 32 MiB scoped VMEM limit on all generations (v7x physical = 64 MiB).
        block_b = B if B <= 1024 else 1024

    # nn.Flatten: contiguous reshape only -- no cast/pad pre-pass; activations
    # make exactly one HBM trip (read f32) into the kernel.
    x_flat = x.reshape(B, D_IN)

    num_blocks = pl.cdiv(B, block_b)
    grid = (num_blocks,)

    flops = 2 * B * (D_IN * D_H1 + D_H1 * D_H2 + D_H2 * D_OUT_PAD)
    bytes_accessed = (
        B * D_IN * 4                                             # f32 activations in
        + B * D_OUT_PAD * 2                                      # bf16 padded logits out
        + (D_IN * D_H1 + D_H1 * D_H2 + D_H2 * D_OUT_PAD) * 2     # bf16 weights
        + (D_H1 + D_H2 + D_OUT_PAD) * 4                          # f32 biases
    )

    out_padded = pl.pallas_call(
        _mlp_kernel,
        out_shape=jax.ShapeDtypeStruct((B, D_OUT_PAD), jnp.bfloat16),
        grid_spec=pltpu.PrefetchScalarGridSpec(
            num_scalar_prefetch=0,
            grid=grid,
            in_specs=[
                # Activations: the only per-step streamed operand. 784 equals
                # the full last dim, so this block shape is legal unpadded.
                # (If xprof ever shows exposed activation DMA at large B, add
                #  pipeline_mode=pl.Buffered(3) here.)
                pl.BlockSpec((block_b, D_IN), lambda i: (i, 0)),
                pl.BlockSpec((D_IN, D_H1), lambda i: (0, 0)),       # W1 (resident)
                pl.BlockSpec((1, D_H1), lambda i: (0, 0)),          # b1
                pl.BlockSpec((D_H1, D_H2), lambda i: (0, 0)),       # W2
                pl.BlockSpec((1, D_H2), lambda i: (0, 0)),          # b2
                pl.BlockSpec((D_H2, D_OUT_PAD), lambda i: (0, 0)),  # W3 (padded cols)
                pl.BlockSpec((1, D_OUT_PAD), lambda i: (0, 0)),     # b3 (padded)
            ],
            out_specs=pl.BlockSpec((block_b, D_OUT_PAD), lambda i: (i, 0)),
        ),
        compiler_params=pltpu.CompilerParams(
            dimension_semantics=_batch_dim_semantics(num_blocks),
            vmem_limit_bytes=32 * 1024 * 1024,
        ),
        cost_estimate=pl.CostEstimate(
            flops=flops, transcendentals=0, bytes_accessed=bytes_accessed
        ),
    )(x_flat, w1p, b1p, w2p, b2p, w3p, b3p)

    # Drop the zero-padded logit columns; return f32 logits like the torch
    # module on f32 inputs.
    return out_padded[:, :D_OUT].astype(jnp.float32)


def init_params(key):
    """Deterministic parameter init matching the torch module's shapes (f32).

    Layout is (in_features, out_features); transpose torch weights if loading
    a real checkpoint.
    """
    shapes = [(D_IN, D_H1), (D_H1, D_H2), (D_H2, D_OUT)]
    params = []
    for i, (fan_in, fan_out) in enumerate(shapes):
        kw, kb = jax.random.split(jax.random.fold_in(key, i))
        bound = 1.0 / jnp.sqrt(fan_in)  # torch nn.Linear default uniform bound
        w = jax.random.uniform(kw, (fan_in, fan_out), jnp.float32, -bound, bound)
        b = jax.random.uniform(kb, (fan_out,), jnp.float32, -bound, bound)
        params += [w, b]
    return tuple(params)


def reference_forward(x, params):
    """Pure-JAX f32 reference matching the torch module semantics."""
    w1, b1, w2, b2, w3, b3 = params
    h = x.reshape(x.shape[0], -1)
    h = jnp.maximum(h @ w1 + b1, 0.0)
    h = jnp.maximum(h @ w2 + b2, 0.0)
    return h @ w3 + b3


if __name__ == "__main__":
    key = jax.random.PRNGKey(0)
    k_params, k_x = jax.random.split(key)

    params = init_params(k_params)
    prepared = prepare_params(params)   # one-time weight prep, outside the hot path

    # MNIST-like NCHW input, small batch.
    x = jax.random.normal(k_x, (8, 1, 28, 28), dtype=jnp.float32)

    out = classifier_forward(x, prepared)
    out = jax.block_until_ready(out)

    ref = reference_forward(x, params)
    assert out.shape == (8, D_OUT), out.shape
    # bf16 operands / bf16 final store (f32 MXU accumulation) vs f32 reference
    # -> loose tolerance; not bit-parity with a pure-f32 PyTorch forward.
    assert jnp.allclose(out, ref, atol=5e-2, rtol=5e-2), (
        "mismatch vs JAX reference; max abs diff = "
        f"{float(jnp.max(jnp.abs(out - ref)))}"
    )

    print("KERNEL_OK")
</pallas_src>

<mosaic_0001>
module attributes {stable_mosaic.version = 11 : i64} {
  func.func @_mlp_kernel(%arg0: i32, %arg1: memref<8x784xf32, #tpu.memory_space<vmem>>, %arg2: memref<784x256xbf16, #tpu.memory_space<vmem>>, %arg3: memref<1x256xf32, #tpu.memory_space<vmem>>, %arg4: memref<256x128xbf16, #tpu.memory_space<vmem>>, %arg5: memref<1x128xf32, #tpu.memory_space<vmem>>, %arg6: memref<128x128xbf16, #tpu.memory_space<vmem>>, %arg7: memref<1x128xf32, #tpu.memory_space<vmem>>, %arg8: memref<8x128xbf16, #tpu.memory_space<vmem>>) attributes {dimension_semantics = [#tpu.dimension_semantics<parallel>], iteration_bounds = array<i64: 1>, scalar_prefetch = 0 : i64, scratch_operands = 0 : i64, tpu.core_type = #tpu.core_type<tc>, window_params = [{transform_indices = @transform_0, window_bounds = array<i64: 8, 784>}, {pipeline_mode = #tpu.pipeline_mode<synchronous>, transform_indices = @transform_1, window_bounds = array<i64: 784, 256>}, {pipeline_mode = #tpu.pipeline_mode<synchronous>, transform_indices = @transform_2, window_bounds = array<i64: 1, 256>}, {pipeline_mode = #tpu.pipeline_mode<synchronous>, transform_indices = @transform_3, window_bounds = array<i64: 256, 128>}, {pipeline_mode = #tpu.pipeline_mode<synchronous>, transform_indices = @transform_4, window_bounds = array<i64: 1, 128>}, {pipeline_mode = #tpu.pipeline_mode<synchronous>, transform_indices = @transform_5, window_bounds = array<i64: 128, 128>}, {pipeline_mode = #tpu.pipeline_mode<synchronous>, transform_indices = @transform_6, window_bounds = array<i64: 1, 128>}, {transform_indices = @transform_7, window_bounds = array<i64: 8, 128>}]} {
    %c0 = arith.constant 0 : index
    %c0_0 = arith.constant 0 : index
    %0 = vector.load %arg1[%c0, %c0_0] : memref<8x784xf32, #tpu.memory_space<vmem>>, vector<8x784xf32>
    %1 = arith.truncf %0 : vector<8x784xf32> to vector<8x784xbf16>
    %c0_1 = arith.constant 0 : index
    %c0_2 = arith.constant 0 : index
    %2 = vector.load %arg2[%c0_1, %c0_2] : memref<784x256xbf16, #tpu.memory_space<vmem>>, vector<784x256xbf16>
    %cst = arith.constant dense<0.000000e+00> : vector<8x256xf32>
    %3 = tpu.matmul %1, %2, %cst {dimension_numbers = #tpu.dot_dimension_numbers<[1], [0], [0], [1], [0, 0, 1, 1], [], []>} : vector<8x784xbf16>, vector<784x256xbf16>, vector<8x256xf32> -> vector<8x256xf32>
    %c0_3 = arith.constant 0 : index
    %c0_4 = arith.constant 0 : index
    %4 = vector.load %arg3[%c0_3, %c0_4] : memref<1x256xf32, #tpu.memory_space<vmem>>, vector<1x256xf32>
    %5 = vector.broadcast %4 : vector<1x256xf32> to vector<8x256xf32>
    %6 = arith.addf %3, %5 : vector<8x256xf32>
    %cst_5 = arith.constant 0.000000e+00 : f32
    %7 = vector.broadcast %cst_5 : f32 to vector<8x256xf32>
    %8 = arith.maximumf %6, %7 : vector<8x256xf32>
    %9 = arith.truncf %8 : vector<8x256xf32> to vector<8x256xbf16>
    %c0_6 = arith.constant 0 : index
    %c0_7 = arith.constant 0 : index
    %10 = vector.load %arg4[%c0_6, %c0_7] : memref<256x128xbf16, #tpu.memory_space<vmem>>, vector<256x128xbf16>
    %cst_8 = arith.constant dense<0.000000e+00> : vector<8x128xf32>
    %11 = tpu.matmul %9, %10, %cst_8 {dimension_numbers = #tpu.dot_dimension_numbers<[1], [0], [0], [1], [0, 0, 1, 1], [], []>} : vector<8x256xbf16>, vector<256x128xbf16>, vector<8x128xf32> -> vector<8x128xf32>
    %c0_9 = arith.constant 0 : index
    %c0_10 = arith.constant 0 : index
    %12 = vector.load %arg5[%c0_9, %c0_10] : memref<1x128xf32, #tpu.memory_space<vmem>>, vector<1x128xf32>
    %13 = vector.broadcast %12 : vector<1x128xf32> to vector<8x128xf32>
    %14 = arith.addf %11, %13 : vector<8x128xf32>
    %cst_11 = arith.constant 0.000000e+00 : f32
    %15 = vector.broadcast %cst_11 : f32 to vector<8x128xf32>
    %16 = arith.maximumf %14, %15 : vector<8x128xf32>
    %17 = arith.truncf %16 : vector<8x128xf32> to vector<8x128xbf16>
    %c0_12 = arith.constant 0 : index
    %c0_13 = arith.constant 0 : index
    %18 = vector.load %arg6[%c0_12, %c0_13] : memref<128x128xbf16, #tpu.memory_space<vmem>>, vector<128x128xbf16>
    %cst_14 = arith.constant dense<0.000000e+00> : vector<8x128xf32>
    %19 = tpu.matmul %17, %18, %cst_14 {dimension_numbers = #tpu.dot_dimension_numbers<[1], [0], [0], [1], [0, 0, 1, 1], [], []>} : vector<8x128xbf16>, vector<128x128xbf16>, vector<8x128xf32> -> vector<8x128xf32>
    %c0_15 = arith.constant 0 : index
    %c0_16 = arith.constant 0 : index
    %20 = vector.load %arg7[%c0_15, %c0_16] : memref<1x128xf32, #tpu.memory_space<vmem>>, vector<1x128xf32>
    %21 = vector.broadcast %20 : vector<1x128xf32> to vector<8x128xf32>
    %22 = arith.addf %19, %21 : vector<8x128xf32>
    %23 = arith.truncf %22 : vector<8x128xf32> to vector<8x128xbf16>
    %c0_17 = arith.constant 0 : index
    %c0_18 = arith.constant 0 : index
    %24 = vector.load %arg8[%c0_17, %c0_18] : memref<8x128xbf16, #tpu.memory_space<vmem>>, vector<8x128xbf16>
    tpu.vector_store %arg8[%c0_17, %c0_18], %23 {strides = array<i32>} : memref<8x128xbf16, #tpu.memory_space<vmem>>, vector<8x128xbf16>,
    return
  }
  func.func @transform_0(%arg0: i32) -> (i32, i32) {
    %c0_i32 = arith.constant 0 : i32
    %c0_i32_0 = arith.constant 0 : i32
    return %arg0, %c0_i32 : i32, i32
  }
  func.func @transform_1(%arg0: i32) -> (i32, i32) {
    %c0_i32 = arith.constant 0 : i32
    %c0_i32_0 = arith.constant 0 : i32
    %c0_i32_1 = arith.constant 0 : i32
    return %c0_i32, %c0_i32_0 : i32, i32
  }
  func.func @transform_2(%arg0: i32) -> (i32, i32) {
    %c0_i32 = arith.constant 0 : i32
    %c0_i32_0 = arith.constant 0 : i32
    %c0_i32_1 = arith.constant 0 : i32
    return %c0_i32, %c0_i32_0 : i32, i32
  }
  func.func @transform_3(%arg0: i32) -> (i32, i32) {
    %c0_i32 = arith.constant 0 : i32
    %c0_i32_0 = arith.constant 0 : i32
    %c0_i32_1 = arith.constant 0 : i32
    return %c0_i32, %c0_i32_0 : i32, i32
  }
  func.func @transform_4(%arg0: i32) -> (i32, i32) {
    %c0_i32 = arith.constant 0 : i32
    %c0_i32_0 = arith.constant 0 : i32
    %c0_i32_1 = arith.constant 0 : i32
    return %c0_i32, %c0_i32_0 : i32, i32
  }
  func.func @transform_5(%arg0: i32) -> (i32, i32) {
    %c0_i32 = arith.constant 0 : i32
    %c0_i32_0 = arith.constant 0 : i32
    %c0_i32_1 = arith.constant 0 : i32
    return %c0_i32, %c0_i32_0 : i32, i32
  }
  func.func @transform_6(%arg0: i32) -> (i32, i32) {
    %c0_i32 = arith.constant 0 : i32
    %c0_i32_0 = arith.constant 0 : i32
    %c0_i32_1 = arith.constant 0 : i32
    return %c0_i32, %c0_i32_0 : i32, i32
  }
  func.func @transform_7(%arg0: i32) -> (i32, i32) {
    %c0_i32 = arith.constant 0 : i32
    %c0_i32_0 = arith.constant 0 : i32
    return %arg0, %c0_i32 : i32, i32
  }
}

</mosaic_0001>

<llo_original>
// kernel: classifier_forward.1
$region0: #{classifier_forward.1}
  #allocation0 [shape = 'u32[]', space=smem, size = 0x4, offset = 0x4, fixed_abs, tag = 'smem constant byte address 0x4 - core index']
  #allocation1 [shape = 'u32[72,128]{1,0:T(1,128)}', space=vmem, size = 0x9000, scoped, tag = 'internal scratch']
  %s0 = inlined_call_operand.vmem [shape: f32[8,784], index: 0, kind: input, shape index: {}]
  %s1 = inlined_call_operand.vmem [shape: bf16[784,256], index: 1, kind: input, shape index: {}]
  %s2 = inlined_call_operand.vmem [shape: f32[1,256], index: 2, kind: input, shape index: {}]
  %s3 = inlined_call_operand.hbm [shape: bf16[256,128], index: 3, kind: input, shape index: {}]
  %s4 = inlined_call_operand.vmem [shape: f32[1,128], index: 4, kind: input, shape index: {}]
  %s5 = inlined_call_operand.hbm [shape: bf16[128,128], index: 5, kind: input, shape index: {}]
  %s6 = inlined_call_operand.vmem [shape: f32[1,128], index: 6, kind: input, shape index: {}]
  %s7 = inlined_call_operand.vmem [shape: bf16[8,128], index: 7, kind: output, shape index: {}]
  %s8 = sld [smem:[#allocation0]]
  $region46: #{classifier_forward.1} parent=0
    _
  %s10 = ssub.s32 1, %s8
  %s11 = scalar_select 0, %s10, %s8
  $region1: #{classifier_forward.1} parent=0
    #allocation2 [shape = 'u8[65536]{0}', space=vmem, size = 0x10000, scoped, tag = 'input window, operand 3, single buffered']
    #allocation3 [shape = 's32[1]{0}', space=sflag, size = 0x4, scoped, tag = 'scoped memory for classifier_forward.1']
    #allocation4 [shape = 'u8[32768]{0}', space=vmem, size = 0x8000, scoped, tag = 'input window, operand 5, single buffered']
    #allocation5 [shape = 's32[1]{0}', space=sflag, size = 0x4, scoped, tag = 'scoped memory for classifier_forward.1']
    %12 = vsyncpa [#allocation3], 0
    %13 = vsyncpa [#allocation5], 0
    // Predicated region
    $region2: #{classifier_forward.1} parent=1 // pred_check
      _
    $region3: #{classifier_forward.1} parent=1 // pred_check_branch
      %15 = sbr.rel (0) target = $region5
    $region4: #{classifier_forward.1} parent=1 // pred_region
      _
    $region5: #{classifier_forward.1} parent=1 // pred_fallthru
      _
    // Predicated region
    $region6: #{classifier_forward.1} parent=1 // pred_check
      _
    $region7: #{classifier_forward.1} parent=1 // pred_check_branch
      %17 = sbr.rel (0) target = $region9
    $region8: #{classifier_forward.1} parent=1 // pred_region
      _
    $region9: #{classifier_forward.1} parent=1 // pred_fallthru
      _
    // Predicated region
    $region10: #{classifier_forward.1} parent=1 // pred_check
      _
    $region11: #{classifier_forward.1} parent=1 // pred_check_branch
      %19 = sbr.rel (0) target = $region13
    $region12: #{classifier_forward.1} parent=1 // pred_region
      _
    $region13: #{classifier_forward.1} parent=1 // pred_fallthru
      _
    // Predicated region
    $region14: #{classifier_forward.1} parent=1 // pred_check
      _
    $region15: #{classifier_forward.1} parent=1 // pred_check_branch
      %21 = sbr.rel (0) target = $region17
    $region16: #{classifier_forward.1} parent=1 // pred_region
      %23 = vsyncadd [#allocation3], 0
      %s24 = sshll.u32 %s3, 4
      %s25 = int_to_ptr.hbm [resolvable:$true] %s24
      %s26 = sshll.u32 [#allocation2], 4
      %s27 = int_to_ptr.vmem [resolvable:$true] %s26
      %32 = dma.hbm_to_vmem [thread:$0]  %s25, 2048, %s27, [#allocation3], 64, 64, 4
    $region17: #{classifier_forward.1} parent=1 // pred_fallthru
      _
    // Predicated region
    $region18: #{classifier_forward.1} parent=1 // pred_check
      _
    $region19: #{classifier_forward.1} parent=1 // pred_check_branch
      %34 = sbr.rel (0) target = $region21
    $region20: #{classifier_forward.1} parent=1 // pred_region
      _
    $region21: #{classifier_forward.1} parent=1 // pred_fallthru
      _
    // Predicated region
    $region22: #{classifier_forward.1} parent=1 // pred_check
      _
    $region23: #{classifier_forward.1} parent=1 // pred_check_branch
      %36 = sbr.rel (0) target = $region25
    $region24: #{classifier_forward.1} parent=1 // pred_region
      %38 = vsyncadd [#allocation5], 0
      %s39 = sshll.u32 %s5, 4
      %s40 = int_to_ptr.hbm [resolvable:$true] %s39
      %s41 = sshll.u32 [#allocation4], 4
      %s42 = int_to_ptr.vmem [resolvable:$true] %s41
      %47 = dma.hbm_to_vmem [thread:$0]  %s40, 1024, %s42, [#allocation5], 64, 64, 4
    $region25: #{classifier_forward.1} parent=1 // pred_fallthru
      _
    // Predicated region
    $region26: #{classifier_forward.1} parent=1 // pred_check
      _
    $region27: #{classifier_forward.1} parent=1 // pred_check_branch
      %49 = sbr.rel (0) target = $region29
    $region28: #{classifier_forward.1} parent=1 // pred_region
      _
    $region29: #{classifier_forward.1} parent=1 // pred_fallthru
      _
    // Predicated region
    $region30: #{classifier_forward.1} parent=1 // pred_check
      _
    $region31: #{classifier_forward.1} parent=1 // pred_check_branch
      %51 = sbr.rel (0) target = $region33
    $region32: #{classifier_forward.1} parent=1 // pred_region
      %53 = dma.done [#allocation3], 2048
    $region33: #{classifier_forward.1} parent=1 // pred_fallthru
      _
    // Predicated region
    $region34: #{classifier_forward.1} parent=1 // pred_check
      _
    $region35: #{classifier_forward.1} parent=1 // pred_check_branch
      %55 = sbr.rel (0) target = $region37
    $region36: #{classifier_forward.1} parent=1 // pred_region
      %57 = dma.done [#allocation5], 1024
    $region37: #{classifier_forward.1} parent=1 // pred_fallthru
      _
    %v59 = vld [vmem:[%s0] sm:$0xff]
    %v60 = vld [vmem:[%s0 + $0x8] sm:$0xff]
    %v61 = vld [vmem:[%s0 + $0x10] sm:$0xff]
    %v62 = vld [vmem:[%s0 + $0x18] sm:$0xff]
    %v63 = vld [vmem:[%s0 + $0x20] sm:$0xff]
    %v64 = vld [vmem:[%s0 + $0x28] sm:$0xff]
    %v65 = vld [vmem:[%s0 + $0x30] sm:$0xff]
    %v66 = vpack.c.bf16 %v59, %v59
    %v67 = vpack.c.bf16 %v60, %v60
    %v68 = vpack.c.bf16 %v61, %v61
    %v69 = vpack.c.bf16 %v62, %v62
    %v70 = vpack.c.bf16 %v63, %v63
    %v71 = vpack.c.bf16 %v64, %v64
    %v72 = vpack.c.bf16 %v65, %v65
    %v73 = vld [vmem:[%s1] sm:$0xff]
    %v74 = vld [vmem:[%s1 + $0x8] sm:$0xff]
    %v75 = vld [vmem:[%s1 + $0x10] sm:$0xff]
    %v76 = vld [vmem:[%s1 + $0x18] sm:$0xff]
    %v77 = vld [vmem:[%s1 + $0x20] sm:$0xff]
    %v78 = vld [vmem:[%s1 + $0x28] sm:$0xff]
    %v79 = vld [vmem:[%s1 + $0x30] sm:$0xff]
    %v80 = vld [vmem:[%s1 + $0x38] sm:$0xff]
    %v81 = vld [vmem:[%s1 + $0x40] sm:$0xff]
    %v82 = vld [vmem:[%s1 + $0x48] sm:$0xff]
    %v83 = vld [vmem:[%s1 + $0x50] sm:$0xff]
    %v84 = vld [vmem:[%s1 + $0x58] sm:$0xff]
    %v85 = vld [vmem:[%s1 + $0x60] sm:$0xff]
    %v86 = vld [vmem:[%s1 + $0x68] sm:$0xff]
    %v87 = vld [vmem:[%s1 + $0x70] sm:$0xff]
    %v88 = vld [vmem:[%s1 + $0x78] sm:$0xff]
    %v89 = vld [vmem:[%s1 + $0x80] sm:$0xff]
    %v90 = vld [vmem:[%s1 + $0x88] sm:$0xff]
    %v91 = vld [vmem:[%s1 + $0x90] sm:$0xff]
    %v92 = vld [vmem:[%s1 + $0x98] sm:$0xff]
    %v93 = vld [vmem:[%s1 + $0xa0] sm:$0xff]
    %v94 = vld [vmem:[%s1 + $0xa8] sm:$0xff]
    %v95 = vld [vmem:[%s1 + $0xb0] sm:$0xff]
    %v96 = vld [vmem:[%s1 + $0xb8] sm:$0xff]
    %v97 = vld [vmem:[%s1 + $0xc0] sm:$0xff]
    %v98 = vld [vmem:[%s1 + $0xc8] sm:$0xff]
    %v99 = vld [vmem:[%s1 + $0xd0] sm:$0xff]
    %v100 = vld [vmem:[%s1 + $0xd8] sm:$0xff]
    %v101 = vld [vmem:[%s1 + $0xe0] sm:$0xff]
    %v102 = vld [vmem:[%s1 + $0xe8] sm:$0xff]
    %v103 = vld [vmem:[%s1 + $0xf0] sm:$0xff]
    %v104 = vld [vmem:[%s1 + $0xf8] sm:$0xff]
    %v105 = vld [vmem:[%s1 + $0x100] sm:$0xff]
    %v106 = vld [vmem:[%s1 + $0x108] sm:$0xff]
    %v107 = vld [vmem:[%s1 + $0x110] sm:$0xff]
    %v108 = vld [vmem:[%s1 + $0x118] sm:$0xff]
    %v109 = vld [vmem:[%s1 + $0x120] sm:$0xff]
    %v110 = vld [vmem:[%s1 + $0x128] sm:$0xff]
    %v111 = vld [vmem:[%s1 + $0x130] sm:$0xff]
    %v112 = vld [vmem:[%s1 + $0x138] sm:$0xff]
    %v113 = vld [vmem:[%s1 + $0x140] sm:$0xff]
    %v114 = vld [vmem:[%s1 + $0x148] sm:$0xff]
    %v115 = vld [vmem:[%s1 + $0x150] sm:$0xff]
    %v116 = vld [vmem:[%s1 + $0x158] sm:$0xff]
    %v117 = vld [vmem:[%s1 + $0x160] sm:$0xff]
    %v118 = vld [vmem:[%s1 + $0x168] sm:$0xff]
    %v119 = vld [vmem:[%s1 + $0x170] sm:$0xff]
    %v120 = vld [vmem:[%s1 + $0x178] sm:$0xff]
    %v121 = vld [vmem:[%s1 + $0x180] sm:$0xff]
    %v122 = vld [vmem:[%s1 + $0x188] sm:$0xff]
    %v123 = vld [vmem:[%s1 + $0x190] sm:$0xff]
    %v124 = vld [vmem:[%s1 + $0x198] sm:$0xff]
    %v125 = vld [vmem:[%s1 + $0x1a0] sm:$0xff]
    %v126 = vld [vmem:[%s1 + $0x1a8] sm:$0xff]
    %v127 = vld [vmem:[%s1 + $0x1b0] sm:$0xff]
    %v128 = vld [vmem:[%s1 + $0x1b8] sm:$0xff]
    %v129 = vld [vmem:[%s1 + $0x1c0] sm:$0xff]
    %v130 = vld [vmem:[%s1 + $0x1c8] sm:$0xff]
    %v131 = vld [vmem:[%s1 + $0x1d0] sm:$0xff]
    %v132 = vld [vmem:[%s1 + $0x1d8] sm:$0xff]
    %v133 = vld [vmem:[%s1 + $0x1e0] sm:$0xff]
    %v134 = vld [vmem:[%s1 + $0x1e8] sm:$0xff]
    %v135 = vld [vmem:[%s1 + $0x1f0] sm:$0xff]
    %v136 = vld [vmem:[%s1 + $0x1f8] sm:$0xff]
    %v137 = vld [vmem:[%s1 + $0x200] sm:$0xff]
    %v138 = vld [vmem:[%s1 + $0x208] sm:$0xff]
    %v139 = vld [vmem:[%s1 + $0x210] sm:$0xff]
    %v140 = vld [vmem:[%s1 + $0x218] sm:$0xff]
    %v141 = vld [vmem:[%s1 + $0x220] sm:$0xff]
    %v142 = vld [vmem:[%s1 + $0x228] sm:$0xff]
    %v143 = vld [vmem:[%s1 + $0x230] sm:$0xff]
    %v144 = vld [vmem:[%s1 + $0x238] sm:$0xff]
    %v145 = vld [vmem:[%s1 + $0x240] sm:$0xff]
    %v146 = vld [vmem:[%s1 + $0x248] sm:$0xff]
    %v147 = vld [vmem:[%s1 + $0x250] sm:$0xff]
    %v148 = vld [vmem:[%s1 + $0x258] sm:$0xff]
    %v149 = vld [vmem:[%s1 + $0x260] sm:$0xff]
    %v150 = vld [vmem:[%s1 + $0x268] sm:$0xff]
    %v151 = vld [vmem:[%s1 + $0x270] sm:$0xff]
    %v152 = vld [vmem:[%s1 + $0x278] sm:$0xff]
    %v153 = vld [vmem:[%s1 + $0x280] sm:$0xff]
    %v154 = vld [vmem:[%s1 + $0x288] sm:$0xff]
    %v155 = vld [vmem:[%s1 + $0x290] sm:$0xff]
    %v156 = vld [vmem:[%s1 + $0x298] sm:$0xff]
    %v157 = vld [vmem:[%s1 + $0x2a0] sm:$0xff]
    %v158 = vld [vmem:[%s1 + $0x2a8] sm:$0xff]
    %v159 = vld [vmem:[%s1 + $0x2b0] sm:$0xff]
    %v160 = vld [vmem:[%s1 + $0x2b8] sm:$0xff]
    %v161 = vld [vmem:[%s1 + $0x2c0] sm:$0xff]
    %v162 = vld [vmem:[%s1 + $0x2c8] sm:$0xff]
    %v163 = vld [vmem:[%s1 + $0x2d0] sm:$0xff]
    %v164 = vld [vmem:[%s1 + $0x2d8] sm:$0xff]
    %v165 = vld [vmem:[%s1 + $0x2e0] sm:$0xff]
    %v166 = vld [vmem:[%s1 + $0x2e8] sm:$0xff]
    %v167 = vld [vmem:[%s1 + $0x2f0] sm:$0xff]
    %v168 = vld [vmem:[%s1 + $0x2f8] sm:$0xff]
    %v169 = vld [vmem:[%s1 + $0x300] sm:$0xff]
    %v170 = vld [vmem:[%s1 + $0x308] sm:$0xff]
    %v171 = vld [vmem:[%s2] sm:$0x3]
    %v173 = vperm.slane %v171, 0
    %v174 = vperm.slane %v171, 1
    %v275 = vunpack.c.l.b16 %v73
    %v276 = vunpack.c.h.b16 %v73
    %v277 = vunpack.c.l.b16 %v74
    %v278 = vunpack.c.h.b16 %v74
    %v279 = vunpack.c.l.b16 %v75
    %v280 = vunpack.c.h.b16 %v75
    %v281 = vunpack.c.l.b16 %v76
    %v282 = vunpack.c.h.b16 %v76
    %v283 = vunpack.c.l.b16 %v77
    %v284 = vunpack.c.h.b16 %v77
    %v285 = vunpack.c.l.b16 %v78
    %v286 = vunpack.c.h.b16 %v78
    %v287 = vunpack.c.l.b16 %v79
    %v288 = vunpack.c.h.b16 %v79
    %v289 = vunpack.c.l.b16 %v80
    %v290 = vunpack.c.h.b16 %v80
    %v291 = vunpack.c.l.b16 %v81
    %v292 = vunpack.c.h.b16 %v81
    %v293 = vunpack.c.l.b16 %v82
    %v294 = vunpack.c.h.b16 %v82
    %v295 = vunpack.c.l.b16 %v83
    %v296 = vunpack.c.h.b16 %v83
    %v297 = vunpack.c.l.b16 %v84
    %v298 = vunpack.c.h.b16 %v84
    %v299 = vunpack.c.l.b16 %v85
    %v300 = vunpack.c.h.b16 %v85
    %v301 = vunpack.c.l.b16 %v86
    %v302 = vunpack.c.h.b16 %v86
    %v303 = vunpack.c.l.b16 %v87
    %v304 = vunpack.c.h.b16 %v87
    %v305 = vunpack.c.l.b16 %v88
    %v306 = vunpack.c.h.b16 %v88
    %v307 = vunpack.c.l.b16 %v89
    %v308 = vunpack.c.h.b16 %v89
    %v309 = vunpack.c.l.b16 %v90
    %v310 = vunpack.c.h.b16 %v90
    %v311 = vunpack.c.l.b16 %v91
    %v312 = vunpack.c.h.b16 %v91
    %v313 = vunpack.c.l.b16 %v92
    %v314 = vunpack.c.h.b16 %v92
    %v315 = vunpack.c.l.b16 %v93
    %v316 = vunpack.c.h.b16 %v93
    %v317 = vunpack.c.l.b16 %v94
    %v318 = vunpack.c.h.b16 %v94
    %v319 = vunpack.c.l.b16 %v95
    %v320 = vunpack.c.h.b16 %v95
    %v321 = vunpack.c.l.b16 %v96
    %v322 = vunpack.c.h.b16 %v96
    %v323 = vunpack.c.l.b16 %v97
    %v324 = vunpack.c.h.b16 %v97
    %v325 = vunpack.c.l.b16 %v98
    %v326 = vunpack.c.h.b16 %v98
    %v327 = vunpack.c.l.b16 %v99
    %v328 = vunpack.c.h.b16 %v99
    %v329 = vunpack.c.l.b16 %v100
    %v330 = vunpack.c.h.b16 %v100
    %v331 = vunpack.c.l.b16 %v101
    %v332 = vunpack.c.h.b16 %v101
    %v333 = vunpack.c.l.b16 %v102
    %v334 = vunpack.c.h.b16 %v102
    %v335 = vunpack.c.l.b16 %v103
    %v336 = vunpack.c.h.b16 %v103
    %v337 = vunpack.c.l.b16 %v104
    %v338 = vunpack.c.h.b16 %v104
    %v339 = vunpack.c.l.b16 %v105
    %v340 = vunpack.c.h.b16 %v105
    %v341 = vunpack.c.l.b16 %v106
    %v342 = vunpack.c.h.b16 %v106
    %v343 = vunpack.c.l.b16 %v107
    %v344 = vunpack.c.h.b16 %v107
    %v345 = vunpack.c.l.b16 %v108
    %v346 = vunpack.c.h.b16 %v108
    %v347 = vunpack.c.l.b16 %v109
    %v348 = vunpack.c.h.b16 %v109
    %v349 = vunpack.c.l.b16 %v110
    %v350 = vunpack.c.h.b16 %v110
    %v351 = vunpack.c.l.b16 %v111
    %v352 = vunpack.c.h.b16 %v111
    %v353 = vunpack.c.l.b16 %v112
    %v354 = vunpack.c.h.b16 %v112
    %v355 = vunpack.c.l.b16 %v113
    %v356 = vunpack.c.h.b16 %v113
    %v357 = vunpack.c.l.b16 %v114
    %v358 = vunpack.c.h.b16 %v114
    %v359 = vunpack.c.l.b16 %v115
    %v360 = vunpack.c.h.b16 %v115
    %v361 = vunpack.c.l.b16 %v116
    %v362 = vunpack.c.h.b16 %v116
    %v363 = vunpack.c.l.b16 %v117
    %v364 = vunpack.c.h.b16 %v117
    %v365 = vunpack.c.l.b16 %v118
    %v366 = vunpack.c.h.b16 %v118
    %v367 = vunpack.c.l.b16 %v119
    %v368 = vunpack.c.h.b16 %v119
    %v369 = vunpack.c.l.b16 %v120
    %v370 = vunpack.c.h.b16 %v120
    %v371 = vunpack.c.l.b16 %v121
    %v372 = vunpack.c.h.b16 %v121
    %v373 = vunpack.c.l.b16 %v122
    %v374 = vunpack.c.h.b16 %v122
    %v375 = vunpack.c.l.b16 %v123
    %v376 = vunpack.c.h.b16 %v123
    %v377 = vunpack.c.l.b16 %v124
    %v378 = vunpack.c.h.b16 %v124
    %v379 = vunpack.c.l.b16 %v125
    %v380 = vunpack.c.h.b16 %v125
    %v381 = vunpack.c.l.b16 %v126
    %v382 = vunpack.c.h.b16 %v126
    %v383 = vunpack.c.l.b16 %v127
    %v384 = vunpack.c.h.b16 %v127
    %v385 = vunpack.c.l.b16 %v128
    %v386 = vunpack.c.h.b16 %v128
    %v387 = vunpack.c.l.b16 %v129
    %v388 = vunpack.c.h.b16 %v129
    %v389 = vunpack.c.l.b16 %v130
    %v390 = vunpack.c.h.b16 %v130
    %v391 = vunpack.c.l.b16 %v131
    %v392 = vunpack.c.h.b16 %v131
    %v393 = vunpack.c.l.b16 %v132
    %v394 = vunpack.c.h.b16 %v132
    %v395 = vunpack.c.l.b16 %v133
    %v396 = vunpack.c.h.b16 %v133
    %v397 = vunpack.c.l.b16 %v134
    %v398 = vunpack.c.h.b16 %v134
    %v399 = vunpack.c.l.b16 %v135
    %v400 = vunpack.c.h.b16 %v135
    %v401 = vunpack.c.l.b16 %v136
    %v402 = vunpack.c.h.b16 %v136
    %v403 = vunpack.c.l.b16 %v137
    %v404 = vunpack.c.h.b16 %v137
    %v405 = vunpack.c.l.b16 %v138
    %v406 = vunpack.c.h.b16 %v138
    %v407 = vunpack.c.l.b16 %v139
    %v408 = vunpack.c.h.b16 %v139
    %v409 = vunpack.c.l.b16 %v140
    %v410 = vunpack.c.h.b16 %v140
    %v411 = vunpack.c.l.b16 %v141
    %v412 = vunpack.c.h.b16 %v141
    %v413 = vunpack.c.l.b16 %v142
    %v414 = vunpack.c.h.b16 %v142
    %v415 = vunpack.c.l.b16 %v143
    %v416 = vunpack.c.h.b16 %v143
    %v417 = vunpack.c.l.b16 %v144
    %v418 = vunpack.c.h.b16 %v144
    %v419 = vunpack.c.l.b16 %v145
    %v420 = vunpack.c.h.b16 %v145
    %v421 = vunpack.c.l.b16 %v146
    %v422 = vunpack.c.h.b16 %v146
    %v423 = vunpack.c.l.b16 %v147
    %v424 = vunpack.c.h.b16 %v147
    %v425 = vunpack.c.l.b16 %v148
    %v426 = vunpack.c.h.b16 %v148
    %v427 = vunpack.c.l.b16 %v149
    %v428 = vunpack.c.h.b16 %v149
    %v429 = vunpack.c.l.b16 %v150
    %v430 = vunpack.c.h.b16 %v150
    %v431 = vunpack.c.l.b16 %v151
    %v432 = vunpack.c.h.b16 %v151
    %v433 = vunpack.c.l.b16 %v152
    %v434 = vunpack.c.h.b16 %v152
    %v435 = vunpack.c.l.b16 %v153
    %v436 = vunpack.c.h.b16 %v153
    %v437 = vunpack.c.l.b16 %v154
    %v438 = vunpack.c.h.b16 %v154
    %v439 = vunpack.c.l.b16 %v155
    %v440 = vunpack.c.h.b16 %v155
    %v441 = vunpack.c.l.b16 %v156
    %v442 = vunpack.c.h.b16 %v156
    %v443 = vunpack.c.l.b16 %v157
    %v444 = vunpack.c.h.b16 %v157
    %v445 = vunpack.c.l.b16 %v158
    %v446 = vunpack.c.h.b16 %v158
    %v447 = vunpack.c.l.b16 %v159
    %v448 = vunpack.c.h.b16 %v159
    %v449 = vunpack.c.l.b16 %v160
    %v450 = vunpack.c.h.b16 %v160
    %v451 = vunpack.c.l.b16 %v161
    %v452 = vunpack.c.h.b16 %v161
    %v453 = vunpack.c.l.b16 %v162
    %v454 = vunpack.c.h.b16 %v162
    %v455 = vunpack.c.l.b16 %v163
    %v456 = vunpack.c.h.b16 %v163
    %v457 = vunpack.c.l.b16 %v164
    %v458 = vunpack.c.h.b16 %v164
    %v459 = vunpack.c.l.b16 %v165
    %v460 = vunpack.c.h.b16 %v165
    %v461 = vunpack.c.l.b16 %v166
    %v462 = vunpack.c.h.b16 %v166
    %v463 = vunpack.c.l.b16 %v167
    %v464 = vunpack.c.h.b16 %v167
    %v465 = vunpack.c.l.b16 %v168
    %v466 = vunpack.c.h.b16 %v168
    %v467 = vunpack.c.l.b16 %v169
    %v468 = vunpack.c.h.b16 %v169
    %v469 = vunpack.c.l.b16 %v170
    %v470 = vunpack.c.h.b16 %v170
    %v471 = vpack.c.b16 %v277, %v275
    %v472 = vpack.c.b16 %v278, %v276
    %v473 = vpack.c.b16 %v281, %v279
    %v474 = vpack.c.b16 %v282, %v280
    %v475 = vpack.c.b16 %v285, %v283
    %v476 = vpack.c.b16 %v286, %v284
    %v477 = vpack.c.b16 %v289, %v287
    %v478 = vpack.c.b16 %v290, %v288
    %v479 = vpack.c.b16 %v293, %v291
    %v480 = vpack.c.b16 %v294, %v292
    %v481 = vpack.c.b16 %v297, %v295
    %v482 = vpack.c.b16 %v298, %v296
    %v483 = vpack.c.b16 %v301, %v299
    %v484 = vpack.c.b16 %v302, %v300
    %v485 = vpack.c.b16 %v305, %v303
    %v486 = vpack.c.b16 %v306, %v304
    %v487 = vpack.c.b16 %v309, %v307
    %v488 = vpack.c.b16 %v310, %v308
    %v489 = vpack.c.b16 %v313, %v311
    %v490 = vpack.c.b16 %v314, %v312
    %v491 = vpack.c.b16 %v317, %v315
    %v492 = vpack.c.b16 %v318, %v316
    %v493 = vpack.c.b16 %v321, %v319
    %v494 = vpack.c.b16 %v322, %v320
    %v495 = vpack.c.b16 %v325, %v323
    %v496 = vpack.c.b16 %v326, %v324
    %v497 = vpack.c.b16 %v329, %v327
    %v498 = vpack.c.b16 %v330, %v328
    %v499 = vpack.c.b16 %v333, %v331
    %v500 = vpack.c.b16 %v334, %v332
    %v501 = vpack.c.b16 %v337, %v335
    %v502 = vpack.c.b16 %v338, %v336
    %v503 = vpack.c.b16 %v341, %v339
    %v504 = vpack.c.b16 %v342, %v340
    %v505 = vpack.c.b16 %v345, %v343
    %v506 = vpack.c.b16 %v346, %v344
    %v507 = vpack.c.b16 %v349, %v347
    %v508 = vpack.c.b16 %v350, %v348
    %v509 = vpack.c.b16 %v353, %v351
    %v510 = vpack.c.b16 %v354, %v352
    %v511 = vpack.c.b16 %v357, %v355
    %v512 = vpack.c.b16 %v358, %v356
    %v513 = vpack.c.b16 %v361, %v359
    %v514 = vpack.c.b16 %v362, %v360
    %v515 = vpack.c.b16 %v365, %v363
    %v516 = vpack.c.b16 %v366, %v364
    %v517 = vpack.c.b16 %v369, %v367
    %v518 = vpack.c.b16 %v370, %v368
    %v519 = vpack.c.b16 %v373, %v371
    %v520 = vpack.c.b16 %v374, %v372
    %v521 = vpack.c.b16 %v377, %v375
    %v522 = vpack.c.b16 %v378, %v376
    %v523 = vpack.c.b16 %v381, %v379
    %v524 = vpack.c.b16 %v382, %v380
    %v525 = vpack.c.b16 %v385, %v383
    %v526 = vpack.c.b16 %v386, %v384
    %v527 = vpack.c.b16 %v389, %v387
    %v528 = vpack.c.b16 %v390, %v388
    %v529 = vpack.c.b16 %v393, %v391
    %v530 = vpack.c.b16 %v394, %v392
    %v531 = vpack.c.b16 %v397, %v395
    %v532 = vpack.c.b16 %v398, %v396
    %v533 = vpack.c.b16 %v401, %v399
    %v534 = vpack.c.b16 %v402, %v400
    %v535 = vpack.c.b16 %v405, %v403
    %v536 = vpack.c.b16 %v406, %v404
    %v537 = vpack.c.b16 %v409, %v407
    %v538 = vpack.c.b16 %v410, %v408
    %v539 = vpack.c.b16 %v413, %v411
    %v540 = vpack.c.b16 %v414, %v412
    %v541 = vpack.c.b16 %v417, %v415
    %v542 = vpack.c.b16 %v418, %v416
    %v543 = vpack.c.b16 %v421, %v419
    %v544 = vpack.c.b16 %v422, %v420
    %v545 = vpack.c.b16 %v425, %v423
    %v546 = vpack.c.b16 %v426, %v424
    %v547 = vpack.c.b16 %v429, %v427
    %v548 = vpack.c.b16 %v430, %v428
    %v549 = vpack.c.b16 %v433, %v431
    %v550 = vpack.c.b16 %v434, %v432
    %v551 = vpack.c.b16 %v437, %v435
    %v552 = vpack.c.b16 %v438, %v436
    %v553 = vpack.c.b16 %v441, %v439
    %v554 = vpack.c.b16 %v442, %v440
    %v555 = vpack.c.b16 %v445, %v443
    %v556 = vpack.c.b16 %v446, %v444
    %v557 = vpack.c.b16 %v449, %v447
    %v558 = vpack.c.b16 %v450, %v448
    %v559 = vpack.c.b16 %v453, %v451
    %v560 = vpack.c.b16 %v454, %v452
    %v561 = vpack.c.b16 %v457, %v455
    %v562 = vpack.c.b16 %v458, %v456
    %v563 = vpack.c.b16 %v461, %v459
    %v564 = vpack.c.b16 %v462, %v460
    %v565 = vpack.c.b16 %v465, %v463
    %v566 = vpack.c.b16 %v466, %v464
    %v567 = vpack.c.b16 %v469, %v467
    %v568 = vpack.c.b16 %v470, %v468
    %vm667 = vcmask 130048
    %v669 = vsel %vm667, %v72, 0
    %671 = vmatpush.bf16.msra.mxu0 %v485
    %672 = vmatpush.bf16.msra.mxu0 %v483
    %673 = vmatpush.bf16.msra.mxu0 %v481
    %674 = vmatpush.bf16.msra.mxu0 %v479
    %675 = vmatpush.bf16.msra.mxu0 %v477
    %676 = vmatpush.bf16.msra.mxu0 %v475
    %677 = vmatpush.bf16.msra.mxu0 %v473
    %678 = vmatpush.bf16.msra.mxu0 %v471
    %679 = vmatmul.bf16.gmra.mxu0 %v66
    %v680 = vpop.f32.mrf.mxu0
    %v681 = vadd.f32 %v173, %v680
    %v682 = vpop.f32.mrf.mxu0
    %683 = vdwg.mxu0
    %684 = vmatpush.bf16.msra.mxu0 %v501
    %685 = vmatpush.bf16.msra.mxu0 %v499
    %686 = vmatpush.bf16.msra.mxu0 %v497
    %687 = vmatpush.bf16.msra.mxu0 %v495
    %688 = vmatpush.bf16.msra.mxu0 %v493
    %689 = vmatpush.bf16.msra.mxu0 %v491
    %690 = vmatpush.bf16.msra.mxu0 %v489
    %691 = vmatpush.bf16.msra.mxu0 %v487
    %692 = vmatmul.bf16.gmra.mxu0 %v67
    %v693 = vpop.f32.mrf.mxu0
    %v694 = vadd.f32 %v681, %v693
    %v695 = vpop.f32.mrf.mxu0
    %696 = vdwg.mxu0
    %697 = vmatpush.bf16.msra.mxu0 %v517
    %698 = vmatpush.bf16.msra.mxu0 %v515
    %699 = vmatpush.bf16.msra.mxu0 %v513
    %700 = vmatpush.bf16.msra.mxu0 %v511
    %701 = vmatpush.bf16.msra.mxu0 %v509
    %702 = vmatpush.bf16.msra.mxu0 %v507
    %703 = vmatpush.bf16.msra.mxu0 %v505
    %704 = vmatpush.bf16.msra.mxu0 %v503
    %705 = vmatmul.bf16.gmra.mxu0 %v68
    %v706 = vpop.f32.mrf.mxu0
    %v707 = vadd.f32 %v694, %v706
    %v708 = vpop.f32.mrf.mxu0
    %709 = vdwg.mxu0
    %710 = vmatpush.bf16.msra.mxu0 %v533
    %711 = vmatpush.bf16.msra.mxu0 %v531
    %712 = vmatpush.bf16.msra.mxu0 %v529
    %713 = vmatpush.bf16.msra.mxu0 %v527
    %714 = vmatpush.bf16.msra.mxu0 %v525
    %715 = vmatpush.bf16.msra.mxu0 %v523
    %716 = vmatpush.bf16.msra.mxu0 %v521
    %717 = vmatpush.bf16.msra.mxu0 %v519
    %718 = vmatmul.bf16.gmra.mxu0 %v69
    %v719 = vpop.f32.mrf.mxu0
    %v720 = vadd.f32 %v707, %v719
    %v721 = vpop.f32.mrf.mxu0
    %722 = vdwg.mxu0
    %723 = vmatpush.bf16.msra.mxu0 %v549
    %724 = vmatpush.bf16.msra.mxu0 %v547
    %725 = vmatpush.bf16.msra.mxu0 %v545
    %726 = vmatpush.bf16.msra.mxu0 %v543
    %727 = vmatpush.bf16.msra.mxu0 %v541
    %728 = vmatpush.bf16.msra.mxu0 %v539
    %729 = vmatpush.bf16.msra.mxu0 %v537
    %730 = vmatpush.bf16.msra.mxu0 %v535
    %731 = vmatmul.bf16.gmra.mxu0 %v70
    %v732 = vpop.f32.mrf.mxu0
    %v733 = vadd.f32 %v720, %v732
    %v734 = vpop.f32.mrf.mxu0
    %735 = vdwg.mxu0
    %736 = vmatpush.bf16.msra.mxu0 %v565
    %737 = vmatpush.bf16.msra.mxu0 %v563
    %738 = vmatpush.bf16.msra.mxu0 %v561
    %739 = vmatpush.bf16.msra.mxu0 %v559
    %740 = vmatpush.bf16.msra.mxu0 %v557
    %741 = vmatpush.bf16.msra.mxu0 %v555
    %742 = vmatpush.bf16.msra.mxu0 %v553
    %743 = vmatpush.bf16.msra.mxu0 %v551
    %744 = vmatmul.bf16.gmra.mxu0 %v71
    %v745 = vpop.f32.mrf.mxu0
    %v746 = vadd.f32 %v733, %v745
    %v747 = vpop.f32.mrf.mxu0
    %748 = vdwg.mxu0
    %749 = vmatpush.bf16.msra.mxu0 0
    %750 = vmatpush.bf16.msra.mxu0 0
    %751 = vmatpush.bf16.msra.mxu0 0
    %752 = vmatpush.bf16.msra.mxu0 0
    %753 = vmatpush.bf16.msra.mxu0 0
    %754 = vmatpush.bf16.msra.mxu0 0
    %755 = vmatpush.bf16.msra.mxu0 0
    %756 = vmatpush.bf16.msra.mxu0 %v567
    %757 = vmatmul.bf16.gmra.mxu0 %v669
    %v758 = vpop.f32.mrf.mxu0
    %v759 = vadd.f32 %v746, %v758
    %v760 = vpop.f32.mrf.mxu0
    %761 = vdwg.mxu0
    %762 = vmatpush.bf16.msra.mxu0 %v486
    %763 = vmatpush.bf16.msra.mxu0 %v484
    %764 = vmatpush.bf16.msra.mxu0 %v482
    %765 = vmatpush.bf16.msra.mxu0 %v480
    %766 = vmatpush.bf16.msra.mxu0 %v478
    %767 = vmatpush.bf16.msra.mxu0 %v476
    %768 = vmatpush.bf16.msra.mxu0 %v474
    %769 = vmatpush.bf16.msra.mxu0 %v472
    %770 = vmatmul.bf16.gmra.mxu0 %v66
    %v771 = vpop.f32.mrf.mxu0
    %v772 = vadd.f32 %v174, %v771
    %v773 = vpop.f32.mrf.mxu0
    %774 = vdwg.mxu0
    %775 = vmatpush.bf16.msra.mxu0 %v502
    %776 = vmatpush.bf16.msra.mxu0 %v500
    %777 = vmatpush.bf16.msra.mxu0 %v498
    %778 = vmatpush.bf16.msra.mxu0 %v496
    %779 = vmatpush.bf16.msra.mxu0 %v494
    %780 = vmatpush.bf16.msra.mxu0 %v492
    %781 = vmatpush.bf16.msra.mxu0 %v490
    %782 = vmatpush.bf16.msra.mxu0 %v488
    %783 = vmatmul.bf16.gmra.mxu0 %v67
    %v784 = vpop.f32.mrf.mxu0
    %v785 = vadd.f32 %v772, %v784
    %v786 = vpop.f32.mrf.mxu0
    %787 = vdwg.mxu0
    %788 = vmatpush.bf16.msra.mxu0 %v518
    %789 = vmatpush.bf16.msra.mxu0 %v516
    %790 = vmatpush.bf16.msra.mxu0 %v514
    %791 = vmatpush.bf16.msra.mxu0 %v512
    %792 = vmatpush.bf16.msra.mxu0 %v510
    %793 = vmatpush.bf16.msra.mxu0 %v508
    %794 = vmatpush.bf16.msra.mxu0 %v506
    %795 = vmatpush.bf16.msra.mxu0 %v504
    %796 = vmatmul.bf16.gmra.mxu0 %v68
    %v797 = vpop.f32.mrf.mxu0
    %v798 = vadd.f32 %v785, %v797
    %v799 = vpop.f32.mrf.mxu0
    %800 = vdwg.mxu0
    %801 = vmatpush.bf16.msra.mxu0 %v534
    %802 = vmatpush.bf16.msra.mxu0 %v532
    %803 = vmatpush.bf16.msra.mxu0 %v530
    %804 = vmatpush.bf16.msra.mxu0 %v528
    %805 = vmatpush.bf16.msra.mxu0 %v526
    %806 = vmatpush.bf16.msra.mxu0 %v524
    %807 = vmatpush.bf16.msra.mxu0 %v522
    %808 = vmatpush.bf16.msra.mxu0 %v520
    %809 = vmatmul.bf16.gmra.mxu0 %v69
    %v810 = vpop.f32.mrf.mxu0
    %v811 = vadd.f32 %v798, %v810
    %v812 = vpop.f32.mrf.mxu0
    %813 = vdwg.mxu0
    %814 = vmatpush.bf16.msra.mxu0 %v550
    %815 = vmatpush.bf16.msra.mxu0 %v548
    %816 = vmatpush.bf16.msra.mxu0 %v546
    %817 = vmatpush.bf16.msra.mxu0 %v544
    %818 = vmatpush.bf16.msra.mxu0 %v542
    %819 = vmatpush.bf16.msra.mxu0 %v540
    %820 = vmatpush.bf16.msra.mxu0 %v538
    %821 = vmatpush.bf16.msra.mxu0 %v536
    %822 = vmatmul.bf16.gmra.mxu0 %v70
    %v823 = vpop.f32.mrf.mxu0
    %v824 = vadd.f32 %v811, %v823
    %v825 = vpop.f32.mrf.mxu0
    %826 = vdwg.mxu0
    %827 = vmatpush.bf16.msra.mxu0 %v566
    %828 = vmatpush.bf16.msra.mxu0 %v564
    %829 = vmatpush.bf16.msra.mxu0 %v562
    %830 = vmatpush.bf16.msra.mxu0 %v560
    %831 = vmatpush.bf16.msra.mxu0 %v558
    %832 = vmatpush.bf16.msra.mxu0 %v556
    %833 = vmatpush.bf16.msra.mxu0 %v554
    %834 = vmatpush.bf16.msra.mxu0 %v552
    %835 = vmatmul.bf16.gmra.mxu0 %v71
    %v836 = vpop.f32.mrf.mxu0
    %v837 = vadd.f32 %v824, %v836
    %v838 = vpop.f32.mrf.mxu0
    %839 = vdwg.mxu0
    %840 = vmatpush.bf16.msra.mxu0 0
    %841 = vmatpush.bf16.msra.mxu0 0
    %842 = vmatpush.bf16.msra.mxu0 0
    %843 = vmatpush.bf16.msra.mxu0 0
    %844 = vmatpush.bf16.msra.mxu0 0
    %845 = vmatpush.bf16.msra.mxu0 0
    %846 = vmatpush.bf16.msra.mxu0 0
    %847 = vmatpush.bf16.msra.mxu0 %v568
    %848 = vmatmul.bf16.gmra.mxu0 %v669
    %v849 = vpop.f32.mrf.mxu0
    %v850 = vadd.f32 %v837, %v849
    %v851 = vpop.f32.mrf.mxu0
    %852 = vdwg.mxu0
    %v853 = vmax.f32 %v759, 0.0
    %v854 = vmax.f32 %v850, 0.0
    %v855 = vpack.c.bf16 %v853, %v853
    %v856 = vpack.c.bf16 %v854, %v854
    %v857 = vld [vmem:[#allocation2] sm:$0xf]
    %v858 = vld [vmem:[#allocation2 + $0x4] sm:$0xf]
    %v859 = vld [vmem:[#allocation2 + $0x8] sm:$0xf]
    %v860 = vld [vmem:[#allocation2 + $0xc] sm:$0xf]
    %v861 = vld [vmem:[#allocation2 + $0x10] sm:$0xf]
    %v862 = vld [vmem:[#allocation2 + $0x14] sm:$0xf]
    %v863 = vld [vmem:[#allocation2 + $0x18] sm:$0xf]
    %v864 = vld [vmem:[#allocation2 + $0x1c] sm:$0xf]
    %v865 = vld [vmem:[#allocation2 + $0x20] sm:$0xf]
    %v866 = vld [vmem:[#allocation2 + $0x24] sm:$0xf]
    %v867 = vld [vmem:[#allocation2 + $0x28] sm:$0xf]
    %v868 = vld [vmem:[#allocation2 + $0x2c] sm:$0xf]
    %v869 = vld [vmem:[#allocation2 + $0x30] sm:$0xf]
    %v870 = vld [vmem:[#allocation2 + $0x34] sm:$0xf]
    %v871 = vld [vmem:[#allocation2 + $0x38] sm:$0xf]
    %v872 = vld [vmem:[#allocation2 + $0x3c] sm:$0xf]
    %v873 = vld [vmem:[#allocation2 + $0x40] sm:$0xf]
    %v874 = vld [vmem:[#allocation2 + $0x44] sm:$0xf]
    %v875 = vld [vmem:[#allocation2 + $0x48] sm:$0xf]
    %v876 = vld [vmem:[#allocation2 + $0x4c] sm:$0xf]
    %v877 = vld [vmem:[#allocation2 + $0x50] sm:$0xf]
    %v878 = vld [vmem:[#allocation2 + $0x54] sm:$0xf]
    %v879 = vld [vmem:[#allocation2 + $0x58] sm:$0xf]
    %v880 = vld [vmem:[#allocation2 + $0x5c] sm:$0xf]
    %v881 = vld [vmem:[#allocation2 + $0x60] sm:$0xf]
    %v882 = vld [vmem:[#allocation2 + $0x64] sm:$0xf]
    %v883 = vld [vmem:[#allocation2 + $0x68] sm:$0xf]
    %v884 = vld [vmem:[#allocation2 + $0x6c] sm:$0xf]
    %v885 = vld [vmem:[#allocation2 + $0x70] sm:$0xf]
    %v886 = vld [vmem:[#allocation2 + $0x74] sm:$0xf]
    %v887 = vld [vmem:[#allocation2 + $0x78] sm:$0xf]
    %v888 = vld [vmem:[#allocation2 + $0x7c] sm:$0xf]
    %v889 = vld [vmem:[%s4] sm:$0x1]
    %v891 = vperm.slane %v889, 0
    %v925 = vunpack.c.l.b16 %v857
    %v926 = vunpack.c.l.b16 %v858
    %v927 = vunpack.c.l.b16 %v859
    %v928 = vunpack.c.l.b16 %v860
    %v929 = vunpack.c.l.b16 %v861
    %v930 = vunpack.c.l.b16 %v862
    %v931 = vunpack.c.l.b16 %v863
    %v932 = vunpack.c.l.b16 %v864
    %v933 = vunpack.c.l.b16 %v865
    %v934 = vunpack.c.l.b16 %v866
    %v935 = vunpack.c.l.b16 %v867
    %v936 = vunpack.c.l.b16 %v868
    %v937 = vunpack.c.l.b16 %v869
    %v938 = vunpack.c.l.b16 %v870
    %v939 = vunpack.c.l.b16 %v871
    %v940 = vunpack.c.l.b16 %v872
    %v941 = vunpack.c.l.b16 %v873
    %v942 = vunpack.c.l.b16 %v874
    %v943 = vunpack.c.l.b16 %v875
    %v944 = vunpack.c.l.b16 %v876
    %v945 = vunpack.c.l.b16 %v877
    %v946 = vunpack.c.l.b16 %v878
    %v947 = vunpack.c.l.b16 %v879
    %v948 = vunpack.c.l.b16 %v880
    %v949 = vunpack.c.l.b16 %v881
    %v950 = vunpack.c.l.b16 %v882
    %v951 = vunpack.c.l.b16 %v883
    %v952 = vunpack.c.l.b16 %v884
    %v953 = vunpack.c.l.b16 %v885
    %v954 = vunpack.c.l.b16 %v886
    %v955 = vunpack.c.l.b16 %v887
    %v956 = vunpack.c.l.b16 %v888
    %v957 = vpack.c.b16 %v926, %v925
    %v958 = vpack.c.b16 %v928, %v927
    %v959 = vpack.c.b16 %v930, %v929
    %v960 = vpack.c.b16 %v932, %v931
    %v961 = vpack.c.b16 %v934, %v933
    %v962 = vpack.c.b16 %v936, %v935
    %v963 = vpack.c.b16 %v938, %v937
    %v964 = vpack.c.b16 %v940, %v939
    %v965 = vpack.c.b16 %v942, %v941
    %v966 = vpack.c.b16 %v944, %v943
    %v967 = vpack.c.b16 %v946, %v945
    %v968 = vpack.c.b16 %v948, %v947
    %v969 = vpack.c.b16 %v950, %v949
    %v970 = vpack.c.b16 %v952, %v951
    %v971 = vpack.c.b16 %v954, %v953
    %v972 = vpack.c.b16 %v956, %v955
    %989 = vmatpush.bf16.msra.mxu0 %v964
    %990 = vmatpush.bf16.msra.mxu0 %v963
    %991 = vmatpush.bf16.msra.mxu0 %v962
    %992 = vmatpush.bf16.msra.mxu0 %v961
    %993 = vmatpush.bf16.msra.mxu0 %v960
    %994 = vmatpush.bf16.msra.mxu0 %v959
    %995 = vmatpush.bf16.msra.mxu0 %v958
    %996 = vmatpush.bf16.msra.mxu0 %v957
    %997 = vmatmul.bf16.gmra.mxu0 %v855
    %v998 = vpop.f32.mrf.mxu0
    %v999 = vadd.f32 %v891, %v998
    %v1000 = vpop.f32.mrf.mxu0
    %1001 = vdwg.mxu0
    %1002 = vmatpush.bf16.msra.mxu0 %v972
    %1003 = vmatpush.bf16.msra.mxu0 %v971
    %1004 = vmatpush.bf16.msra.mxu0 %v970
    %1005 = vmatpush.bf16.msra.mxu0 %v969
    %1006 = vmatpush.bf16.msra.mxu0 %v968
    %1007 = vmatpush.bf16.msra.mxu0 %v967
    %1008 = vmatpush.bf16.msra.mxu0 %v966
    %1009 = vmatpush.bf16.msra.mxu0 %v965
    %1010 = vmatmul.bf16.gmra.mxu0 %v856
    %v1011 = vpop.f32.mrf.mxu0
    %v1012 = vadd.f32 %v999, %v1011
    %v1013 = vpop.f32.mrf.mxu0
    %1014 = vdwg.mxu0
    %v1015 = vmax.f32 %v1012, 0.0
    %v1016 = vpack.c.bf16 %v1015, %v1015
    %v1017 = vld [vmem:[#allocation4] sm:$0xf]
    %v1018 = vld [vmem:[#allocation4 + $0x4] sm:$0xf]
    %v1019 = vld [vmem:[#allocation4 + $0x8] sm:$0xf]
    %v1020 = vld [vmem:[#allocation4 + $0xc] sm:$0xf]
    %v1021 = vld [vmem:[#allocation4 + $0x10] sm:$0xf]
    %v1022 = vld [vmem:[#allocation4 + $0x14] sm:$0xf]
    %v1023 = vld [vmem:[#allocation4 + $0x18] sm:$0xf]
    %v1024 = vld [vmem:[#allocation4 + $0x1c] sm:$0xf]
    %v1025 = vld [vmem:[#allocation4 + $0x20] sm:$0xf]
    %v1026 = vld [vmem:[#allocation4 + $0x24] sm:$0xf]
    %v1027 = vld [vmem:[#allocation4 + $0x28] sm:$0xf]
    %v1028 = vld [vmem:[#allocation4 + $0x2c] sm:$0xf]
    %v1029 = vld [vmem:[#allocation4 + $0x30] sm:$0xf]
    %v1030 = vld [vmem:[#allocation4 + $0x34] sm:$0xf]
    %v1031 = vld [vmem:[#allocation4 + $0x38] sm:$0xf]
    %v1032 = vld [vmem:[#allocation4 + $0x3c] sm:$0xf]
    %v1033 = vld [vmem:[%s6] sm:$0x1]
    %v1035 = vperm.slane %v1033, 0
    %v1053 = vunpack.c.l.b16 %v1017
    %v1054 = vunpack.c.l.b16 %v1018
    %v1055 = vunpack.c.l.b16 %v1019
    %v1056 = vunpack.c.l.b16 %v1020
    %v1057 = vunpack.c.l.b16 %v1021
    %v1058 = vunpack.c.l.b16 %v1022
    %v1059 = vunpack.c.l.b16 %v1023
    %v1060 = vunpack.c.l.b16 %v1024
    %v1061 = vunpack.c.l.b16 %v1025
    %v1062 = vunpack.c.l.b16 %v1026
    %v1063 = vunpack.c.l.b16 %v1027
    %v1064 = vunpack.c.l.b16 %v1028
    %v1065 = vunpack.c.l.b16 %v1029
    %v1066 = vunpack.c.l.b16 %v1030
    %v1067 = vunpack.c.l.b16 %v1031
    %v1068 = vunpack.c.l.b16 %v1032
    %v1069 = vpack.c.b16 %v1054, %v1053
    %v1070 = vpack.c.b16 %v1056, %v1055
    %v1071 = vpack.c.b16 %v1058, %v1057
    %v1072 = vpack.c.b16 %v1060, %v1059
    %v1073 = vpack.c.b16 %v1062, %v1061
    %v1074 = vpack.c.b16 %v1064, %v1063
    %v1075 = vpack.c.b16 %v1066, %v1065
    %v1076 = vpack.c.b16 %v1068, %v1067
    %1085 = vmatpush.bf16.msra.mxu0 %v1076
    %1086 = vmatpush.bf16.msra.mxu0 %v1075
    %1087 = vmatpush.bf16.msra.mxu0 %v1074
    %1088 = vmatpush.bf16.msra.mxu0 %v1073
    %1089 = vmatpush.bf16.msra.mxu0 %v1072
    %1090 = vmatpush.bf16.msra.mxu0 %v1071
    %1091 = vmatpush.bf16.msra.mxu0 %v1070
    %1092 = vmatpush.bf16.msra.mxu0 %v1069
    %1093 = vmatmul.bf16.gmra.mxu0 %v1016
    %v1094 = vpop.f32.mrf.mxu0
    %v1095 = vadd.f32 %v1035, %v1094
    %v1096 = vpop.f32.mrf.mxu0
    %1097 = vdwg.mxu0
    %v1098 = vpack.c.bf16 %v1095, %v1095
    %1099 = vst [vmem:[%s7] sm:$0xf] %v1098
    // Predicated region
    $region38: #{classifier_forward.1} parent=1 // pred_check
      _
    $region39: #{classifier_forward.1} parent=1 // pred_check_branch
      %1101 = sbr.rel (0) target = $region41
    $region40: #{classifier_forward.1} parent=1 // pred_region
      _
    $region41: #{classifier_forward.1} parent=1 // pred_fallthru
      _
    // Predicated region
    $region42: #{classifier_forward.1} parent=1 // pred_check
      _
    $region43: #{classifier_forward.1} parent=1 // pred_check_branch
      %1103 = sbr.rel (0) target = $region45
    $region44: #{classifier_forward.1} parent=1 // pred_region
      _
    $region45: #{classifier_forward.1} parent=1 // pred_fallthru
      _
    %1104 = vsyncpa [#allocation3], 1
    %1105 = vsyncpa [#allocation5], 1

</llo_original>
